<compile_context>
chip_gen: v7x
topology: tpu7x:2x2x1
jax: 0.10.0
libtpu: 0.0.40
codegen_flags: <defaults>
</compile_context>

<pallas_src>
import functools

import numpy as np
import jax
import jax.numpy as jnp
from jax.experimental import pallas as pl
from jax.experimental.pallas import tpu as pltpu

# ----------------------------------------------------------------------------
# Label-word dictionaries (from the module). hardisk / screen were constructor
# args not shown in the snippet, so deterministic synthetic ones are used.
# ----------------------------------------------------------------------------
cpu_label_words = {0: ['5 GHz corei7_10750h', '5 GHz core_i7_family', '5 GHz core_i9_12900h', '8550 GHz core_i7_8550u', 'Apple M2'], 1: ['4 GHz Intel Core i7', '4.7 GHz ryzen_7', '4.2 GHz apple_ci5', '4.1 GHz core_i7_8750h', '4.7 GHz apple_ci7', '4.5 core_i5', '4.7 GHz amd_ryzen_7', '4.7 GHz core_i7', '4.1 GHz core_i3', '4.4 GHz amd_ryzen_7_5800h', '4.6 GHz core_i7_11800h', '4.4 GHz core_i5', '4 GHz ryzen_7_3700u', '4.5 GHz core_i7_family', '4.5 GHz intel_core_i5_1135g7', '4.1 GHz core_i7', '4.6 GHz Intel_Mobile_CPU', '4 GHz core_i7', '4.2 GHz intel_core_i5_1135g7', '4.6 GHz core_i7_family', '4.6 GHz ryzen_9', '4.7 GHz Intel_Core_i7_Extreme', '4.4 GHz ryzen_7', '4.4 GHz ryzen_7_5800h', '4.7 GHz core_i7_family', 'Intel Core i7-1260P', 'Intel Core i7-8550U'], 2: ['3.8 GHz Intel Core i7', '3.8 GHz Core i7 Family', '3.5 GHz Intel Core i7', '3 GHz 8032', '3.5 GHz 8032', '3 GHz AMD A Series', '3.1 GHz Intel Core i5', '3.4 GHz Intel Core i5', '3.6 GHz AMD A Series', '3.5 GHz Intel Core i5', '3 GHz', '3.9 GHz core_i7', '3.4 GHz core_i3_1005g1', '3.7 GHz intel_core_i5_1135g7', '3.5 GHz core_i7', '3.8 GHz amd_ryzen_7', '3.4 GHz core_i5', '3.4 apple_ci7', '3.6 GHz ryzen_5_2500u', '3.2 ryzen_7', 'AMD A9-9420', 'Apple M1', 'Intel i5-7200U (2.5GHz)'], 3: ['2.8 GHz Intel Core i7', '2.7 GHz Core i7 7500U', '2.7 GHz Core i7 2.7 GHz', '2.7 GHz Intel Core i7', '2.1 GHz Intel Core i7', '2.2 GHz Intel Core i5', '2.3 GHz Intel Core i5', '2.6 GHz Intel Core i5', '2.5 GHz Intel Core i5', '2.5 GHz Core i5 7200U', 'Intel Core i5', '2 GHz None', '2 GHz AMD A Series', '2.7 GHz Intel Core i3', '2.5 GHz Pentium', '2.5 GHz AMD A Series', '2.16 GHz Intel Celeron', '2.16 GHz Athlon 2650e', '2.7 GHz 8032', '2.48 GHz Intel Celeron', '2.4 GHz AMD A Series', '2 GHz Celeron D Processor 360', '2.4 GHz Intel Core i3', '2.3 GHz Intel Core i3', '2.4 GHz Core i3-540', '2.5 GHz Intel Core Duo', '2.2 GHz Intel Core i3', '2.7 GHz AMD A Series', '2.8 GHz 8032', '2.5 GHz Athlon 2650e', '2.9 GHz Intel Celeron', '2 GB', 'Celeron N3060', '2.1 GHz mediatek_mt8127', '2.4 GHz apple_ci5', '2.5 GHz core_i5_family', '2.5 GHz core_i5', '2.2 GHz amd_ryzen_5_pro_1600', '2.48 GHz intel_core_2_duo', '2.9 GHz Core_i7_3520M', '2.5 GHz core_i5_1035g1', '2.3 GHz core_i5', '2.8 GHz celeron', '2.3 GHz ryzen_7', '2.5 GHz amd_a_series', '2.16 GHz celeron_n3350', '2.2 GHz core_i7', '2.8 GHz core_i7', '2.9 GHz core_i5_4300u', '2.3 GHz AMD Ryzen 7 3700U', '2.4 GHz 1_2GHz_Cortex_A8', '2.5 GHz apple_ci5', '2.4 GHz celeron', '2.7 GHz core_i7', '2.8 GHz intel_core_i7_1165g7', '2.2 GHz 8032', '2 GHz core_i5', '2.8 GHz Intel Core i7-7700HQ', '2 GHz AMD Ryzen 5 2500U', '2.6 GHz corei7_10750h', 'Intel Core i7-7500U 2.7 GHz', 'Intel Celeron N3350', 'Intel Quad Core i7-7700HQ', 'intel_core_i7_1165g7'], 4: ['1.5 GHz', '1.8 GHz 8032', '1.8 GHz AMD E Series', '1.7 GHz', '1.1 GHz Intel Celeron', '1.6 GHz Intel Celeron', '1.6 GHz Intel Core 2 Duo', '1.7 GHz Exynos 5000 Series', '1.6 GHz Celeron N3060', '1.6 GHz AMD E Series', '1.1 GHz Pentium', '1.6 GHz', '1.6 GHz Intel Mobile CPU', '1.6 GHz Celeron N3050', '1.8 GHz Intel Core i7', '1.6 GHz Intel Core i5', '1.6 GHz core_i5_family', '1.7 GHz 1_2GHz_Cortex_A8', '1.5 GHz intel_core_2_duo', '1.6 GHz core_i5', '1.83 GHz celeron', '1.6 GHz celeron', '1.8 GHz core_i7_8550u', '1.6 GHz celeron_n', '1.1 GHz 8032', '1.1 GHz intel_core_2_duo', '1.8 GHz intel_core_2_quad', '1.6 GHz Intel_Mobile_CPU', '1.1 GHz celeron', '1.6 GHz 8032', '1.8 GHz core_i7', '1.6 GHz celeron_n3060', '1.6 GHz Intel Core i5-8250U', '1 GHz core_m', '1.7 GHz core_i7', '1.6 GHz core_i5_8250u', '1.9 GHz core_i7', '1.8 GHz Intel Core i5-8250U', '1.7 GHz core_i5', '1.1 GHz celeron_n', 'Intel Core i5-8250U Quad Core', 'Intel Core i7-8550U 1.8GHz']}
graphic_label_words = {0: ['Best NVIDIA GeForce 3xxx', 'Apple M2', 'Apple M1'], 1: ['NVIDIA GeForce GTX 1050', 'NVIDIA GeForce GTX 1050 Ti', 'GTX 1050 Ti', 'NVIDIA GeForce GTX 1060', 'NVIDIA GeForce GTX 1070', '4GB GDDR5 NVIDIA GeForce GTX 1050', 'GTX 1050', 'NVIDIA GeForce 940MX', 'NVIDIA GeForce GTX 1660Ti', 'NVIDIA GeForce MX130', 'NVIDIA GTX 1650Ti', 'NVIDIA GeForce MX550', 'NVIDIA GeForce GTX 1650', 'NVIDIA GeForce MX150', 'NVIDIA GeForce GTX 1660 Ti'], 2: ['AMD Radeon R2', 'AMD Radeon R4', 'radeon r5', 'AMD Radeon R5 Graphics', 'AMD Radeon R7', 'AMD Radeon Vega 9', 'AMD Radeon R5', 'AMD Radeon Vega 10', 'AMD Radeon RX Vega 10', 'AMD Radeon Vega 8'], 3: ['Intel UHD Graphics 620', 'Intel Iris Plus Graphics 640', 'Intel HD Graphics 3000', 'Intel', 'Intel HD 620 graphics', 'Intel HD Graphics 500', 'Intel HD Graphics 520', 'Intel HD Graphics 620', 'Intel HD Graphics 400', 'Intel Celeron', 'Intel HD Graphics 505', 'Intel HD Graphics 5500', 'Intel HD Graphics', 'Intel?? HD Graphics 620 (up to 2.07 GB)', 'intel 620', 'Intel HD Graphics 615', 'Intel UHD Graphics', 'Intel HD Graphics 500', 'Intel GMA 3150', 'Intel HD Graphics 620', 'Intel HD Graphics', 'Intel Arc A350M Graphics', 'Intel UHD Graphics 600', 'Intel HD Graphics 520', 'Intel HD Graphics 400', 'Intel HD Graphics 4400', 'Intel Iris Xe Graphics'], 4: ['Integrated', 'integrated intel hd graphics', 'integrated AMD Radeon R5 Graphics', 'Integrated Graphics', 'Integrated intel hd graphics', 'Integrated HD Graphics', 'Integrated AMD Radeon RX Vega 10 Graphics', 'Integrated Mediatek Graphics', 'Intel Integrated Graphics'], 5: ['others']}
ram_label_words = {0: ['20 GB DDR4', '24 GB DDR4', '32 GB DDR4', '32 GB SO-DIMM DDR4', '64 GB DDR4'], 1: ['16 GB DDR4', '16 GB LPDDR3_SDRAM', '16 GB SDRAM', '16 GB DDR SDRAM', '16 GB DDR3L SDRAM', '16 GB DDR5', '16 GB LPDDR5', '16 GB DDR3', '16 GB LPDDR4', '16 GB LPDDR4X', '16 GB DDR4', '16 GB LPDDR3', '16 GB Lpddr 5'], 2: ['12 GB', '12 GB DDR3', '12 GB DDR SDRAM', '12 GB DDR4'], 3: ['8 GB SDRAM DDR3', '8 GB DDR3 SDRAM', '8 GB DDR4 2666MHz', '8 GB DDR4', '8 GB LPDDR3', '8 GB DDR4 SDRAM', '8 GB DDR4_SDRAM', '8 GB 2-in1 Media Card Reader, USB 3.1, Type-C', '8 GB DDR SDRAM', '8 GB SDRAM DDR4', '8 GB ddr4', '8 GB sdram', '8 GB SDRAM', '8 GB', '8GB', '8 GB DDR3', '8 GB DDR4', '8 GB LPDDR4', '8 GB A8', '8 GB LPDDR3', '8 GB DDR', '8 GB DDR3 SDRAM', '8GB DDR3L', '8 GB DIMM DDR4-2400', '8 GB SDRAM'], 4: ['6 GB SDRAM', '6 GB', '6 GB SDRAM DDR4', '6 GB DDR SDRAM', '4 GB LPDDR3_SDRAM', '4 GB SDRAM DDR4', '4 GB ddr3_sdram', '4 GB DDR3', '4 GB SDRAM', '4 GB', '4 GB SDRAM DDR3', '4 GB DDR4', '4 GB DDR3 SDRAM', '4 GB DDR SDRAM', '4 GB DDR3L', '4GB DDR4 SDRAM', '4 GB LPDDR3', '4 GB DDR3', '4 GB SDRAM', '4 GB A8', '4 GB SDRAM DDR', '4 GB DDR4', '2 GB SDRAM DDR3', '2 GB SDRAM', '2 GB DDR3L SDRAM', '2 GB DDR3 SDRAM', '2 GB DDR3', '2 GB DDR4', 'flash_memory_solid_state']}
# TODO(synk): hardisk/screen label words are constructor args not present in the
# provided snippet; deterministic synthetic dictionaries stand in for them.
hardisk_label_words = {0: ['1 TB SSD', '2 TB SSD', '512 GB NVMe SSD'], 1: ['256 GB SSD', '128 GB SSD'], 2: ['1 TB HDD', '500 GB HDD', '2 TB HDD 5400 rpm'], 3: ['64 GB eMMC', '32 GB eMMC Flash']}
screen_label_words = {0: ['17.3 inch FHD', '17 inch'], 1: ['15.6 inch FHD IPS', '15.6 inch', '14 inch FHD'], 2: ['13.3 inch Retina', '11.6 inch HD']}

# Mask-position sums from the forward pass (order-3 cross-label masking).
TASK_MASK_IDS = {
    "cpu":     (15, 16, 17, 18, 19, 20, 0, 5, 6, 7, 8),
    "graphic": (15, 16, 17, 21, 22, 23, 1, 5, 9, 10, 11),
    "hardisk": (15, 18, 19, 21, 22, 24, 2, 6, 9, 12, 13),
    "ram":     (16, 18, 20, 21, 23, 24, 3, 7, 10, 12, 14),
    "screen":  (17, 19, 20, 22, 23, 24, 4, 8, 11, 13, 14),
}
TASK_LABEL_WORDS = {
    "cpu": cpu_label_words, "graphic": graphic_label_words,
    "hardisk": hardisk_label_words, "ram": ram_label_words,
    "screen": screen_label_words,
}
TASK_ORDER = ("cpu", "graphic", "hardisk", "ram", "screen")

NUM_MASKS = 25
VOCAB = 256
BATCH = 2
LOG_EPS = float(np.log(1e-15))


def _round_up(x, m):
    return ((x + m - 1) // m) * m


def _synth_tokenize(word: str, vocab: int):
    """Deterministic synthetic tokenizer: one token id per whitespace piece."""
    # TODO(synk): real HF tokenizer not reproducible in-script; deterministic hash stands in.
    toks = []
    for piece in word.split():
        h = 7
        for ch in piece:
            h = (h * 131 + ord(ch)) % vocab
        toks.append(h)
    return toks


def build_task_tables(label_words: dict, vocab: int):
    """Per-task ManualVerbalizer tables.

    proj[v, c*W + w] : 1/n_tokens for every token v of label word w of class c
                       (the 'mean' multi-token handler as a matmul).
    valid[cw]        : 1.0 for real label words, 0.0 for padding slots.
    agg[cw, c]       : valid / per-class-count (masked mean over words).
    """
    classes = sorted(label_words.keys())
    n_cls = len(classes)
    max_w = max(len(label_words[c]) for c in classes)
    cw = n_cls * max_w
    proj = np.zeros((vocab, cw), np.float32)
    valid = np.zeros((cw,), np.float32)
    for ci, c in enumerate(classes):
        for wi, word in enumerate(label_words[c]):
            flat = ci * max_w + wi
            toks = _synth_tokenize(word, vocab)
            inv = 1.0 / (len(toks) + 1e-15)
            for t in toks:
                proj[t, flat] += inv
            valid[flat] = 1.0
    counts = valid.reshape(n_cls, max_w).sum(axis=1)
    agg = np.zeros((cw, n_cls), np.float32)
    for ci in range(n_cls):
        for wi in range(max_w):
            if valid[ci * max_w + wi] > 0:
                agg[ci * max_w + wi, ci] = 1.0 / counts[ci]
    return proj, valid, agg, n_cls, max_w


def build_fused_tables(vocab=VOCAB, batch=BATCH, num_masks=NUM_MASKS):
    """Concatenated + lane-padded tables so one kernel does all 5 tasks.

    selb     (R_PAD, M*B)      : row t*B+b selects (sums) task t's 11 mask rows
                                 of batch item b -> mask-sum becomes one matmul.
    proj_cat (V, CW_PAD)       : per-task verbalizer projections, concatenated,
                                 total width padded to a multiple of 128.
    bias     (R_PAD, CW_PAD)   : 0 for row's own-task valid words, -10000 for
                                 word padding, other tasks' columns and lane
                                 padding (their exp underflows to 0 in f32, so
                                 one row softmax == each task's own softmax).
    agg_cat  (CW_PAD, C_PAD)   : block-diagonal masked-mean aggregation; output
                                 class dim padded to 128 for lane-dense stores.
    """
    per_task = [build_task_tables(TASK_LABEL_WORDS[t], vocab) for t in TASK_ORDER]
    cw_total = sum(p[0].shape[1] for p in per_task)           # 320+162+12+145+9 = 648
    c_total = sum(p[3] for p in per_task)                     # 5+6+4+5+3 = 23
    cw_pad = _round_up(cw_total, 128)                         # 768
    c_pad = _round_up(c_total, 128)                           # 128
    r_pad = _round_up(len(TASK_ORDER) * batch, 8)             # 10 -> 16

    selb = np.zeros((r_pad, num_masks * batch), np.float32)
    proj_cat = np.zeros((vocab, cw_pad), np.float32)
    bias = np.full((r_pad, cw_pad), -10000.0, np.float32)
    agg_cat = np.zeros((cw_pad, c_pad), np.float32)

    class_slices = []
    cw_off = 0
    c_off = 0
    for ti, task in enumerate(TASK_ORDER):
        proj, valid, agg, n_cls, _ = per_task[ti]
        cw = proj.shape[1]
        proj_cat[:, cw_off:cw_off + cw] = proj
        agg_cat[cw_off:cw_off + cw, c_off:c_off + n_cls] = agg
        for b in range(batch):
            r = ti * batch + b
            bias[r, cw_off:cw_off + cw] = -10000.0 * (1.0 - valid)
            for m_idx in TASK_MASK_IDS[task]:
                selb[r, b * num_masks + m_idx] = 1.0
        class_slices.append((c_off, n_cls))
        cw_off += cw
        c_off += n_cls

    return (jnp.asarray(selb), jnp.asarray(proj_cat), jnp.asarray(bias),
            jnp.asarray(agg_cat), tuple(class_slices))


# ----------------------------------------------------------------------------
# Single fused Pallas kernel (all 5 tasks, all batch rows, one invocation).
# ----------------------------------------------------------------------------
def _fused_verbalizer_kernel(selb_ref, oam_ref, proj_ref, bias_ref, agg_hbm_ref,
                             out_ref, agg_vmem, agg_sem):
    # Kick off the agg-table DMA (HBM -> VMEM scratch, ~393 KB) immediately so
    # it overlaps the two matmuls + softmax instead of serializing before the
    # body (biggest win on v5e's slower HBM; harmless elsewhere).
    agg_cp = pltpu.make_async_copy(agg_hbm_ref, agg_vmem, agg_sem)
    agg_cp.start()

    # (1) Mask-position sums for all 5 tasks x B batch rows as ONE selection
    #     matmul on the MXU (replaces 5 x 11 serial VPU adds on 2-sublane tiles).
    x = jnp.dot(selb_ref[...], oam_ref[...],
                preferred_element_type=jnp.float32)            # (R_PAD, V)

    # (2) Batched projection onto every task's label-word slots at once, plus
    #     precomputed -10000 bias (word padding + out-of-task + lane padding).
    lw = jnp.dot(x, proj_ref[...],
                 preferred_element_type=jnp.float32) + bias_ref[...]   # (R_PAD, CW_PAD)

    # Row-wise log-softmax via the identity logp = (lw - m) - log(sum exp):
    # avoids the full-width (16,768) EUP log and the reciprocal/Newton + e*inv
    # VALU work of the naive path; only one (16,1) log remains.
    # The clamp at log(1e-15) mimics the reference's log(p + 1e-15) floor.
    m = jnp.max(lw, axis=-1, keepdims=True)
    s = jnp.sum(jnp.exp(lw - m), axis=-1, keepdims=True)
    logp = jnp.maximum((lw - m) - jnp.log(s), LOG_EPS)

    # (3) Masked mean over words per class as a block-diagonal matmul; output is
    #     a lane-dense (R_PAD, 128) slab, per-task slices taken by the consumer.
    agg_cp.wait()
    out_ref[...] = jnp.dot(logp, agg_vmem[...],
                           preferred_element_type=jnp.float32)  # (R_PAD, C_PAD)


@jax.jit
def clm_order3_slab(outputs_at_mask, selb, proj, bias, agg):
    """outputs_at_mask: (B, 25, V) extracted-at-mask logits -> (R_PAD, C_PAD) slab."""
    b_sz, n_masks, vocab = outputs_at_mask.shape
    # Free, contiguous reshape: row index b*M + m matches the selection matrix.
    oam = outputs_at_mask.reshape(b_sz * n_masks, vocab)
    r_pad = selb.shape[0]
    c_pad = agg.shape[1]
    cw_pad = agg.shape[0]
    vmem = pl.BlockSpec(memory_space=pltpu.MemorySpace.VMEM)
    return pl.pallas_call(
        _fused_verbalizer_kernel,
        out_shape=jax.ShapeDtypeStruct((r_pad, c_pad), jnp.float32),
        in_specs=[vmem, vmem, vmem, vmem,
                  pl.BlockSpec(memory_space=pl.ANY)],   # agg: raw HBM, manual DMA
        out_specs=vmem,
        scratch_shapes=[pltpu.VMEM((cw_pad, c_pad), jnp.float32),
                        pltpu.SemaphoreType.DMA(())],
        cost_estimate=pl.CostEstimate(
            flops=9_850_000, transcendentals=12_500, bytes_accessed=1_300_000),
    )(selb, oam, proj, bias, agg)


def clm_order3_forward(outputs_at_mask, tables, batch=BATCH):
    """Module-equivalent forward: returns 5 per-task log-prob tensors.

    The jitted pallas path returns only the lane-dense (16,128) slab; the 5
    tiny per-task slices are taken host-side in numpy so no sub-128-lane XLA
    slice/copy ops are dispatched per call.
    """
    selb, proj, bias, agg, class_slices = tables
    slab = jax.block_until_ready(clm_order3_slab(outputs_at_mask, selb, proj, bias, agg))
    slab_np = np.asarray(slab)
    return tuple(
        slab_np[ti * batch:(ti + 1) * batch, c_off:c_off + n_cls]
        for ti, (c_off, n_cls) in enumerate(class_slices)
    )


# ----------------------------------------------------------------------------
# Pure-JAX reference mirroring the module (per-task, unfused, unpadded).
# ----------------------------------------------------------------------------
def reference_forward(outputs_at_mask):
    oam_mbv = jnp.transpose(outputs_at_mask, (1, 0, 2))   # torch.transpose(x, 0, 1)
    results = []
    for task in TASK_ORDER:
        proj, valid, agg, _, _ = build_task_tables(TASK_LABEL_WORDS[task], VOCAB)
        x = sum(oam_mbv[i] for i in TASK_MASK_IDS[task])
        lw = x @ jnp.asarray(proj) - 10000.0 * (1.0 - jnp.asarray(valid))[None, :]
        p = jax.nn.softmax(lw, axis=-1)
        results.append(jnp.log(p + 1e-15) @ jnp.asarray(agg))
    return results


if __name__ == "__main__":
    key = jax.random.PRNGKey(0)
    # TODO(synk): the pretrained LM + MixedTemplate + extract_at_mask gather are
    # not reproducible as a kernel; we synthesize the extracted-at-mask logits.
    outputs_at_mask = jax.random.normal(
        key, (BATCH, NUM_MASKS, VOCAB), dtype=jnp.float32)

    tables = build_fused_tables()

    outs = clm_order3_forward(outputs_at_mask, tables, batch=BATCH)

    refs = reference_forward(outputs_at_mask)
    refs = jax.block_until_ready(refs)

    ok = True
    for task, got, ref in zip(TASK_ORDER, outs, refs):
        if not np.allclose(np.asarray(got), np.asarray(ref), rtol=1e-4, atol=1e-4):
            ok = False
            print(f"MISMATCH in task {task}")

    if ok:
        print("KERNEL_OK")
</pallas_src>

<mosaic_0001>
module attributes {stable_mosaic.version = 11 : i64} {
  func.func @_fused_verbalizer_kernel(%arg0: memref<16x50xf32, #tpu.memory_space<vmem>>, %arg1: memref<50x256xf32, #tpu.memory_space<vmem>>, %arg2: memref<256x768xf32, #tpu.memory_space<vmem>>, %arg3: memref<16x768xf32, #tpu.memory_space<vmem>>, %arg4: memref<768x128xf32, #tpu.memory_space<any>>, %arg5: memref<16x128xf32, #tpu.memory_space<vmem>>, %arg6: memref<768x128xf32, #tpu.memory_space<vmem>>, %arg7: memref<!tpu.dma_semaphore, #tpu.memory_space<semaphore_mem>>) attributes {dimension_semantics = [], scalar_prefetch = 0 : i64, scratch_operands = 2 : i64, tpu.core_type = #tpu.core_type<tc>} {
    tpu.enqueue_dma source(%arg4 : memref<768x128xf32, #tpu.memory_space<any>>) target(%arg6 : memref<768x128xf32, #tpu.memory_space<vmem>>) target_semaphore(%arg7 : memref<!tpu.dma_semaphore, #tpu.memory_space<semaphore_mem>>)
    %c0 = arith.constant 0 : index
    %c0_0 = arith.constant 0 : index
    %0 = vector.load %arg0[%c0, %c0_0] : memref<16x50xf32, #tpu.memory_space<vmem>>, vector<16x50xf32>
    %c0_1 = arith.constant 0 : index
    %c0_2 = arith.constant 0 : index
    %1 = vector.load %arg1[%c0_1, %c0_2] : memref<50x256xf32, #tpu.memory_space<vmem>>, vector<50x256xf32>
    %cst = arith.constant dense<0.000000e+00> : vector<16x256xf32>
    %2 = tpu.matmul %0, %1, %cst {dimension_numbers = #tpu.dot_dimension_numbers<[1], [0], [0], [1], [0, 0, 1, 1], [], []>} : vector<16x50xf32>, vector<50x256xf32>, vector<16x256xf32> -> vector<16x256xf32>
    %c0_3 = arith.constant 0 : index
    %c0_4 = arith.constant 0 : index
    %3 = vector.load %arg2[%c0_3, %c0_4] : memref<256x768xf32, #tpu.memory_space<vmem>>, vector<256x768xf32>
    %cst_5 = arith.constant dense<0.000000e+00> : vector<16x768xf32>
    %4 = tpu.matmul %2, %3, %cst_5 {dimension_numbers = #tpu.dot_dimension_numbers<[1], [0], [0], [1], [0, 0, 1, 1], [], []>} : vector<16x256xf32>, vector<256x768xf32>, vector<16x768xf32> -> vector<16x768xf32>
    %c0_6 = arith.constant 0 : index
    %c0_7 = arith.constant 0 : index
    %5 = vector.load %arg3[%c0_6, %c0_7] : memref<16x768xf32, #tpu.memory_space<vmem>>, vector<16x768xf32>
    %6 = arith.addf %4, %5 : vector<16x768xf32>
    %cst_8 = arith.constant dense<0xFF800000> : vector<16xf32>
    %7 = vector.multi_reduction <maximumf>, %6, %cst_8 [1] : vector<16x768xf32> to vector<16xf32>
    %8 = vector.shape_cast %7 : vector<16xf32> to vector<16x1xf32>
    %9 = vector.broadcast %8 : vector<16x1xf32> to vector<16x768xf32>
    %10 = arith.subf %6, %9 : vector<16x768xf32>
    %11 = math.exp %10 : vector<16x768xf32>
    %cst_9 = arith.constant dense<0.000000e+00> : vector<16xf32>
    %12 = vector.multi_reduction <add>, %11, %cst_9 [1] : vector<16x768xf32> to vector<16xf32>
    %13 = vector.shape_cast %12 : vector<16xf32> to vector<16x1xf32>
    %14 = vector.broadcast %8 : vector<16x1xf32> to vector<16x768xf32>
    %15 = arith.subf %6, %14 : vector<16x768xf32>
    %16 = math.log %13 : vector<16x1xf32>
    %17 = vector.broadcast %16 : vector<16x1xf32> to vector<16x768xf32>
    %18 = arith.subf %15, %17 : vector<16x768xf32>
    %cst_10 = arith.constant -34.5387764 : f32
    %19 = vector.broadcast %cst_10 : f32 to vector<16x768xf32>
    %20 = arith.maximumf %18, %19 : vector<16x768xf32>
    tpu.wait_dma2 semaphore(%arg7 : memref<!tpu.dma_semaphore, #tpu.memory_space<semaphore_mem>>) src(%arg4 : memref<768x128xf32, #tpu.memory_space<any>>) dst(%arg6 : memref<768x128xf32, #tpu.memory_space<vmem>>)
    %c0_11 = arith.constant 0 : index
    %c0_12 = arith.constant 0 : index
    %21 = vector.load %arg6[%c0_11, %c0_12] : memref<768x128xf32, #tpu.memory_space<vmem>>, vector<768x128xf32>
    %cst_13 = arith.constant dense<0.000000e+00> : vector<16x128xf32>
    %22 = tpu.matmul %20, %21, %cst_13 {dimension_numbers = #tpu.dot_dimension_numbers<[1], [0], [0], [1], [0, 0, 1, 1], [], []>} : vector<16x768xf32>, vector<768x128xf32>, vector<16x128xf32> -> vector<16x128xf32>
    %c0_14 = arith.constant 0 : index
    %c0_15 = arith.constant 0 : index
    %23 = vector.load %arg5[%c0_14, %c0_15] : memref<16x128xf32, #tpu.memory_space<vmem>>, vector<16x128xf32>
    tpu.vector_store %arg5[%c0_14, %c0_15], %22 {strides = array<i32>} : memref<16x128xf32, #tpu.memory_space<vmem>>, vector<16x128xf32>,
    return
  }
}

</mosaic_0001>

<llo_original>
// kernel: clm_order3_slab.1
$region0: #{clm_order3_slab.1}
  #allocation0 [shape = 'u32[]', space=smem, size = 0x4, offset = 0x4, fixed_abs, tag = 'smem constant byte address 0x4 - core index']
  #allocation1 [shape = 'u32[144,128]{1,0:T(1,128)}', space=vmem, size = 0x12000, scoped, tag = 'internal scratch']
  #allocation2 [shape = 'f32[768,128]{1,0:T(8,128)}', space=vmem, size = 0x60000, scoped, tag = 'scratch operand']
  #allocation3 [shape = 's32[1]{0}', space=sflag, size = 0x4, scoped, tag = 'scratch operand']
  #allocation8 [shape = 's32[]', space=sflag, size = 0x4, offset = 0, fixed_abs, tag = 'sflag constant byte address 0x0 - dummy sync flag']
  #allocation9 [shape = 's32[]', space=sflag, size = 0x4, offset = 0, fixed_abs, tag = 'sflag constant byte address 0x0 - dummy sync flag']
  #allocation10 [shape = 'u32[]', space=smem, size = 0x4, offset = 0x44, fixed_abs, tag = 'smem constant byte address 0x44 - assertion arg 0']
  #allocation11 [shape = 'u32[]', space=smem, size = 0x4, offset = 0x48, fixed_abs, tag = 'smem constant byte address 0x48 - assertion arg 1']
  %s0 = inlined_call_operand.vmem [shape: f32[16,50], index: 0, kind: input, shape index: {}]
  %s1 = inlined_call_operand.vmem [shape: f32[50,256], index: 1, kind: input, shape index: {}]
  %s2 = inlined_call_operand.hbm [shape: f32[256,768], index: 2, kind: input, shape index: {}]
  %s3 = inlined_call_operand.vmem [shape: f32[16,768], index: 3, kind: input, shape index: {}]
  %s4 = inlined_call_operand.hbm [shape: f32[768,128], index: 4, kind: input, shape index: {}]
  %s5 = inlined_call_operand.hbm [shape: f32[16,128], index: 5, kind: output, shape index: {}]
  %s6 = sld [smem:[#allocation0]]
  $region34: #{clm_order3_slab.1} parent=0
    _
  %s8 = ssub.s32 1, %s6
  %s9 = scalar_select 0, %s8, %s6
  $region1: #{clm_order3_slab.1} parent=0
    #allocation4 [shape = 'u8[786432]{0}', space=vmem, size = 0xc0000, scoped, tag = 'input window, operand 2, single buffered']
    #allocation5 [shape = 's32[1]{0}', space=sflag, size = 0x4, scoped, tag = 'scoped memory for clm_order3_slab.1']
    #allocation6 [shape = 's32[1]{0}', space=sflag, size = 0x4, scoped, tag = 'scoped memory for clm_order3_slab.1']
    #allocation7 [shape = 'u8[8192]{0}', space=vmem, size = 0x2000, scoped, tag = 'output window, operand 0, single buffered']
    %10 = vsyncpa [#allocation5], 0
    %11 = vsyncpa [#allocation6], 0
    // Predicated region
    $region2: #{clm_order3_slab.1} parent=1 // pred_check
      _
    $region3: #{clm_order3_slab.1} parent=1 // pred_check_branch
      %13 = sbr.rel (0) target = $region5
    $region4: #{clm_order3_slab.1} parent=1 // pred_region
      _
    $region5: #{clm_order3_slab.1} parent=1 // pred_fallthru
      _
    // Predicated region
    $region6: #{clm_order3_slab.1} parent=1 // pred_check
      _
    $region7: #{clm_order3_slab.1} parent=1 // pred_check_branch
      %15 = sbr.rel (0) target = $region9
    $region8: #{clm_order3_slab.1} parent=1 // pred_region
      _
    $region9: #{clm_order3_slab.1} parent=1 // pred_fallthru
      _
    // Predicated region
    $region10: #{clm_order3_slab.1} parent=1 // pred_check
      _
    $region11: #{clm_order3_slab.1} parent=1 // pred_check_branch
      %17 = sbr.rel (0) target = $region13
    $region12: #{clm_order3_slab.1} parent=1 // pred_region
      %s19 = ssub.s32 24576, 24576
      %20 = vsyncadd [#allocation5], %s19
      %s21 = sshll.u32 [#allocation4], 4
      %s22 = int_to_ptr.vmem [resolvable:$true] %s21
      %27 = dma.hbm_to_vmem [thread:$0]  %s2, 24576, %s22, [#allocation5], 768, 768, 48
    $region13: #{clm_order3_slab.1} parent=1 // pred_fallthru
      _
    // Predicated region
    $region14: #{clm_order3_slab.1} parent=1 // pred_check
      _
    $region15: #{clm_order3_slab.1} parent=1 // pred_check_branch
      %29 = sbr.rel (0) target = $region17
    $region16: #{clm_order3_slab.1} parent=1 // pred_region
      _
    $region17: #{clm_order3_slab.1} parent=1 // pred_fallthru
      _
    // Predicated region
    $region18: #{clm_order3_slab.1} parent=1 // pred_check
      _
    $region19: #{clm_order3_slab.1} parent=1 // pred_check_branch
      %31 = sbr.rel (0) target = $region21
    $region20: #{clm_order3_slab.1} parent=1 // pred_region
      %32 = dma.done [#allocation5], 24576
    $region21: #{clm_order3_slab.1} parent=1 // pred_fallthru
      _
    // Predicated region
    $region22: #{clm_order3_slab.1} parent=1 // pred_check
      _
    $region23: #{clm_order3_slab.1} parent=1 // pred_check_branch
      %34 = sbr.rel target = $region25
    $region24: #{clm_order3_slab.1} parent=1 // pred_region
      %35 = sst [smem:[#allocation10]] [#allocation9]
      %36 = sst [smem:[#allocation11]] [#allocation8]
    $region25: #{clm_order3_slab.1} parent=1 // pred_fallthru
      _
    %38 = shalt.err (0)
    %s40 = sshll.u32 [#allocation2], 4
    %s41 = int_to_ptr.vmem [resolvable:$true] %s40
    %43 = dma.hbm_to_vmem [thread:$0]  %s4, 12288, %s41, [#allocation3]
    %v44 = vld [vmem:[%s0] sm:$0xff]
    %v45 = vld [vmem:[%s0 + $0x8] sm:$0xff]
    %v46 = vld [vmem:[%s1] sm:$0xff]
    %v47 = vld [vmem:[%s1 + $0x8] sm:$0xff]
    %v48 = vld [vmem:[%s1 + $0x10] sm:$0xff]
    %v49 = vld [vmem:[%s1 + $0x18] sm:$0xff]
    %v50 = vld [vmem:[%s1 + $0x20] sm:$0xff]
    %v51 = vld [vmem:[%s1 + $0x28] sm:$0xff]
    %v52 = vld [vmem:[%s1 + $0x30] sm:$0xff]
    %v53 = vld [vmem:[%s1 + $0x38] sm:$0xff]
    %v54 = vld [vmem:[%s1 + $0x40] sm:$0xff]
    %v55 = vld [vmem:[%s1 + $0x48] sm:$0xff]
    %v56 = vld [vmem:[%s1 + $0x50] sm:$0xff]
    %v57 = vld [vmem:[%s1 + $0x58] sm:$0xff]
    %v58 = vld [vmem:[%s1 + $0x60] sm:$0x3]
    %v59 = vld [vmem:[%s1 + $0x68] sm:$0x3]
    %vm60 = vcmask 408576
    %v62 = vsel %vm60, %v44, 0
    %v65 = vsel %vm60, %v45, 0
    %vm67 = vcmask 1041408
    %v69 = vsel %vm67, %v58, 0
    %v72 = vsel %vm67, %v59, 0
    %74 = vmatprep.subr.mxu0 %v47
    %75 = vmatpush1.msra.mxu0 %v46
    %76 = vmatprep.subr.mxu0 %v49
    %77 = vmatpush1.msra.mxu0 %v48
    %78 = vmatprep.subr.mxu0 %v51
    %79 = vmatpush1.msra.mxu0 %v50
    %80 = vmatprep.subr.mxu0 %v53
    %81 = vmatpush1.msra.mxu0 %v52
    %82 = vmatprep.subr.mxu0 %v55
    %83 = vmatpush1.msra.mxu0 %v54
    %84 = vmatprep.subr.mxu0 %v57
    %85 = vmatpush1.msra.mxu0 %v56
    %86 = vmatprep.subr.mxu0 %v72
    %87 = vmatpush1.msra.mxu0 %v69
    %88 = vmatprep.subr.mxu0 0.0
    %89 = vmatpush1.msra.mxu0 0.0
    %90 = vmatprep.subr.mxu0 0.0
    %91 = vmatpush1.msra.mxu0 0.0
    %92 = vmatprep.subr.mxu0 0.0
    %93 = vmatpush1.msra.mxu0 0.0
    %94 = vmatprep.subr.mxu0 0.0
    %95 = vmatpush1.msra.mxu0 0.0
    %96 = vmatprep.subr.mxu0 0.0
    %97 = vmatpush1.msra.mxu0 0.0
    %98 = vmatprep.subr.mxu0 0.0
    %99 = vmatpush1.msra.mxu0 0.0
    %100 = vmatprep.subr.mxu0 0.0
    %101 = vmatpush1.msra.mxu0 0.0
    %102 = vmatprep.subr.mxu0 0.0
    %103 = vmatpush1.msra.mxu0 0.0
    %104 = vmatprep.subr.mxu0 0.0
    %105 = vmatpush1.msra.mxu0 0.0
    %106 = vmatprep.subr.mxu0 0.0
    %107 = vmatpush1.msra.mxu0 0.0
    %108 = vmatprep.subr.mxu0 0.0
    %109 = vmatpush1.msra.mxu0 0.0
    %110 = vmatprep.subr.mxu0 0.0
    %111 = vmatpush1.msra.mxu0 0.0
    %112 = vmatprep.subr.mxu0 0.0
    %113 = vmatpush1.msra.mxu0 0.0
    %114 = vmatprep.subr.mxu0 0.0
    %115 = vmatpush1.msra.mxu0 0.0
    %116 = vmatprep.subr.mxu0 0.0
    %117 = vmatpush1.msra.mxu0 0.0
    %118 = vmatprep.subr.mxu0 0.0
    %119 = vmatpush1.msra.mxu0 0.0
    %120 = vmatprep.subr.mxu0 0.0
    %121 = vmatpush1.msra.mxu0 0.0
    %122 = vmatprep.subr.mxu0 0.0
    %123 = vmatpush1.msra.mxu0 0.0
    %124 = vmatprep.subr.mxu0 0.0
    %125 = vmatpush1.msra.mxu0 0.0
    %126 = vmatprep.subr.mxu0 0.0
    %127 = vmatpush1.msra.mxu0 0.0
    %128 = vmatprep.subr.mxu0 0.0
    %129 = vmatpush1.msra.mxu0 0.0
    %130 = vmatprep.subr.mxu0 0.0
    %131 = vmatpush1.msra.mxu0 0.0
    %132 = vmatprep.subr.mxu0 0.0
    %133 = vmatpush1.msra.mxu0 0.0
    %134 = vmatprep.subr.mxu0 0.0
    %135 = vmatpush1.msra.mxu0 0.0
    %136 = vmatprep.subr.mxu0 0.0
    %137 = vmatpush1.msra.mxu0 0.0
    %138 = vmatprep.mubr.f32.mxu0 0.0
    %139 = vmatmul.mubr.f32.gmra.mrb[0].mxu0 %v62
    %v140 = vpop.f32.mrb[0].mxu0
    %v141 = vadd.f32 0.0, %v140
    %v142 = vpop.f32.mrb[0].mxu0
    %v143 = vadd.f32 0.0, %v142
    %144 = vmatprep.mubr.f32.mxu0 0.0
    %145 = vmatmul.mubr.f32.gmra.mrb[0].mxu0 %v65
    %v146 = vpop.f32.mrb[0].mxu0
    %v147 = vadd.f32 0.0, %v146
    %v148 = vpop.f32.mrb[0].mxu0
    %v149 = vadd.f32 0.0, %v148
    %150 = vdwg.mxu0
    %v151 = vld [vmem:[#allocation4] sm:$0xff]
    %v152 = vld [vmem:[#allocation4 + $0x8] sm:$0xff]
    %v153 = vld [vmem:[#allocation4 + $0x10] sm:$0xff]
    %v154 = vld [vmem:[#allocation4 + $0x18] sm:$0xff]
    %v155 = vld [vmem:[#allocation4 + $0x20] sm:$0xff]
    %v156 = vld [vmem:[#allocation4 + $0x28] sm:$0xff]
    %v157 = vld [vmem:[#allocation4 + $0x30] sm:$0xff]
    %v158 = vld [vmem:[#allocation4 + $0x38] sm:$0xff]
    %v159 = vld [vmem:[#allocation4 + $0x40] sm:$0xff]
    %v160 = vld [vmem:[#allocation4 + $0x48] sm:$0xff]
    %v161 = vld [vmem:[#allocation4 + $0x50] sm:$0xff]
    %v162 = vld [vmem:[#allocation4 + $0x58] sm:$0xff]
    %v163 = vld [vmem:[#allocation4 + $0x60] sm:$0xff]
    %v164 = vld [vmem:[#allocation4 + $0x68] sm:$0xff]
    %v165 = vld [vmem:[#allocation4 + $0x70] sm:$0xff]
    %v166 = vld [vmem:[#allocation4 + $0x78] sm:$0xff]
    %v167 = vld [vmem:[#allocation4 + $0x80] sm:$0xff]
    %v168 = vld [vmem:[#allocation4 + $0x88] sm:$0xff]
    %v169 = vld [vmem:[#allocation4 + $0x90] sm:$0xff]
    %v170 = vld [vmem:[#allocation4 + $0x98] sm:$0xff]
    %v171 = vld [vmem:[#allocation4 + $0xa0] sm:$0xff]
    %v172 = vld [vmem:[#allocation4 + $0xa8] sm:$0xff]
    %v173 = vld [vmem:[#allocation4 + $0xb0] sm:$0xff]
    %v174 = vld [vmem:[#allocation4 + $0xb8] sm:$0xff]
    %v175 = vld [vmem:[#allocation4 + $0xc0] sm:$0xff]
    %v176 = vld [vmem:[#allocation4 + $0xc8] sm:$0xff]
    %v177 = vld [vmem:[#allocation4 + $0xd0] sm:$0xff]
    %v178 = vld [vmem:[#allocation4 + $0xd8] sm:$0xff]
    %v179 = vld [vmem:[#allocation4 + $0xe0] sm:$0xff]
    %v180 = vld [vmem:[#allocation4 + $0xe8] sm:$0xff]
    %v181 = vld [vmem:[#allocation4 + $0xf0] sm:$0xff]
    %v182 = vld [vmem:[#allocation4 + $0xf8] sm:$0xff]
    %v183 = vld [vmem:[#allocation4 + $0x100] sm:$0xff]
    %v184 = vld [vmem:[#allocation4 + $0x108] sm:$0xff]
    %v185 = vld [vmem:[#allocation4 + $0x110] sm:$0xff]
    %v186 = vld [vmem:[#allocation4 + $0x118] sm:$0xff]
    %v187 = vld [vmem:[#allocation4 + $0x120] sm:$0xff]
    %v188 = vld [vmem:[#allocation4 + $0x128] sm:$0xff]
    %v189 = vld [vmem:[#allocation4 + $0x130] sm:$0xff]
    %v190 = vld [vmem:[#allocation4 + $0x138] sm:$0xff]
    %v191 = vld [vmem:[#allocation4 + $0x140] sm:$0xff]
    %v192 = vld [vmem:[#allocation4 + $0x148] sm:$0xff]
    %v193 = vld [vmem:[#allocation4 + $0x150] sm:$0xff]
    %v194 = vld [vmem:[#allocation4 + $0x158] sm:$0xff]
    %v195 = vld [vmem:[#allocation4 + $0x160] sm:$0xff]
    %v196 = vld [vmem:[#allocation4 + $0x168] sm:$0xff]
    %v197 = vld [vmem:[#allocation4 + $0x170] sm:$0xff]
    %v198 = vld [vmem:[#allocation4 + $0x178] sm:$0xff]
    %v199 = vld [vmem:[#allocation4 + $0x180] sm:$0xff]
    %v200 = vld [vmem:[#allocation4 + $0x188] sm:$0xff]
    %v201 = vld [vmem:[#allocation4 + $0x190] sm:$0xff]
    %v202 = vld [vmem:[#allocation4 + $0x198] sm:$0xff]
    %v203 = vld [vmem:[#allocation4 + $0x1a0] sm:$0xff]
    %v204 = vld [vmem:[#allocation4 + $0x1a8] sm:$0xff]
    %v205 = vld [vmem:[#allocation4 + $0x1b0] sm:$0xff]
    %v206 = vld [vmem:[#allocation4 + $0x1b8] sm:$0xff]
    %v207 = vld [vmem:[#allocation4 + $0x1c0] sm:$0xff]
    %v208 = vld [vmem:[#allocation4 + $0x1c8] sm:$0xff]
    %v209 = vld [vmem:[#allocation4 + $0x1d0] sm:$0xff]
    %v210 = vld [vmem:[#allocation4 + $0x1d8] sm:$0xff]
    %v211 = vld [vmem:[#allocation4 + $0x1e0] sm:$0xff]
    %v212 = vld [vmem:[#allocation4 + $0x1e8] sm:$0xff]
    %v213 = vld [vmem:[#allocation4 + $0x1f0] sm:$0xff]
    %v214 = vld [vmem:[#allocation4 + $0x1f8] sm:$0xff]
    %v215 = vld [vmem:[#allocation4 + $0x200] sm:$0xff]
    %v216 = vld [vmem:[#allocation4 + $0x208] sm:$0xff]
    %v217 = vld [vmem:[#allocation4 + $0x210] sm:$0xff]
    %v218 = vld [vmem:[#allocation4 + $0x218] sm:$0xff]
    %v219 = vld [vmem:[#allocation4 + $0x220] sm:$0xff]
    %v220 = vld [vmem:[#allocation4 + $0x228] sm:$0xff]
    %v221 = vld [vmem:[#allocation4 + $0x230] sm:$0xff]
    %v222 = vld [vmem:[#allocation4 + $0x238] sm:$0xff]
    %v223 = vld [vmem:[#allocation4 + $0x240] sm:$0xff]
    %v224 = vld [vmem:[#allocation4 + $0x248] sm:$0xff]
    %v225 = vld [vmem:[#allocation4 + $0x250] sm:$0xff]
    %v226 = vld [vmem:[#allocation4 + $0x258] sm:$0xff]
    %v227 = vld [vmem:[#allocation4 + $0x260] sm:$0xff]
    %v228 = vld [vmem:[#allocation4 + $0x268] sm:$0xff]
    %v229 = vld [vmem:[#allocation4 + $0x270] sm:$0xff]
    %v230 = vld [vmem:[#allocation4 + $0x278] sm:$0xff]
    %v231 = vld [vmem:[#allocation4 + $0x280] sm:$0xff]
    %v232 = vld [vmem:[#allocation4 + $0x288] sm:$0xff]
    %v233 = vld [vmem:[#allocation4 + $0x290] sm:$0xff]
    %v234 = vld [vmem:[#allocation4 + $0x298] sm:$0xff]
    %v235 = vld [vmem:[#allocation4 + $0x2a0] sm:$0xff]
    %v236 = vld [vmem:[#allocation4 + $0x2a8] sm:$0xff]
    %v237 = vld [vmem:[#allocation4 + $0x2b0] sm:$0xff]
    %v238 = vld [vmem:[#allocation4 + $0x2b8] sm:$0xff]
    %v239 = vld [vmem:[#allocation4 + $0x2c0] sm:$0xff]
    %v240 = vld [vmem:[#allocation4 + $0x2c8] sm:$0xff]
    %v241 = vld [vmem:[#allocation4 + $0x2d0] sm:$0xff]
    %v242 = vld [vmem:[#allocation4 + $0x2d8] sm:$0xff]
    %v243 = vld [vmem:[#allocation4 + $0x2e0] sm:$0xff]
    %v244 = vld [vmem:[#allocation4 + $0x2e8] sm:$0xff]
    %v245 = vld [vmem:[#allocation4 + $0x2f0] sm:$0xff]
    %v246 = vld [vmem:[#allocation4 + $0x2f8] sm:$0xff]
    %v247 = vld [vmem:[#allocation4 + $0x300] sm:$0xff]
    %v248 = vld [vmem:[#allocation4 + $0x308] sm:$0xff]
    %v249 = vld [vmem:[#allocation4 + $0x310] sm:$0xff]
    %v250 = vld [vmem:[#allocation4 + $0x318] sm:$0xff]
    %v251 = vld [vmem:[#allocation4 + $0x320] sm:$0xff]
    %v252 = vld [vmem:[#allocation4 + $0x328] sm:$0xff]
    %v253 = vld [vmem:[#allocation4 + $0x330] sm:$0xff]
    %v254 = vld [vmem:[#allocation4 + $0x338] sm:$0xff]
    %v255 = vld [vmem:[#allocation4 + $0x340] sm:$0xff]
    %v256 = vld [vmem:[#allocation4 + $0x348] sm:$0xff]
    %v257 = vld [vmem:[#allocation4 + $0x350] sm:$0xff]
    %v258 = vld [vmem:[#allocation4 + $0x358] sm:$0xff]
    %v259 = vld [vmem:[#allocation4 + $0x360] sm:$0xff]
    %v260 = vld [vmem:[#allocation4 + $0x368] sm:$0xff]
    %v261 = vld [vmem:[#allocation4 + $0x370] sm:$0xff]
    %v262 = vld [vmem:[#allocation4 + $0x378] sm:$0xff]
    %v263 = vld [vmem:[#allocation4 + $0x380] sm:$0xff]
    %v264 = vld [vmem:[#allocation4 + $0x388] sm:$0xff]
    %v265 = vld [vmem:[#allocation4 + $0x390] sm:$0xff]
    %v266 = vld [vmem:[#allocation4 + $0x398] sm:$0xff]
    %v267 = vld [vmem:[#allocation4 + $0x3a0] sm:$0xff]
    %v268 = vld [vmem:[#allocation4 + $0x3a8] sm:$0xff]
    %v269 = vld [vmem:[#allocation4 + $0x3b0] sm:$0xff]
    %v270 = vld [vmem:[#allocation4 + $0x3b8] sm:$0xff]
    %v271 = vld [vmem:[#allocation4 + $0x3c0] sm:$0xff]
    %v272 = vld [vmem:[#allocation4 + $0x3c8] sm:$0xff]
    %v273 = vld [vmem:[#allocation4 + $0x3d0] sm:$0xff]
    %v274 = vld [vmem:[#allocation4 + $0x3d8] sm:$0xff]
    %v275 = vld [vmem:[#allocation4 + $0x3e0] sm:$0xff]
    %v276 = vld [vmem:[#allocation4 + $0x3e8] sm:$0xff]
    %v277 = vld [vmem:[#allocation4 + $0x3f0] sm:$0xff]
    %v278 = vld [vmem:[#allocation4 + $0x3f8] sm:$0xff]
    %v279 = vld [vmem:[#allocation4 + $0x400] sm:$0xff]
    %v280 = vld [vmem:[#allocation4 + $0x408] sm:$0xff]
    %v281 = vld [vmem:[#allocation4 + $0x410] sm:$0xff]
    %v282 = vld [vmem:[#allocation4 + $0x418] sm:$0xff]
    %v283 = vld [vmem:[#allocation4 + $0x420] sm:$0xff]
    %v284 = vld [vmem:[#allocation4 + $0x428] sm:$0xff]
    %v285 = vld [vmem:[#allocation4 + $0x430] sm:$0xff]
    %v286 = vld [vmem:[#allocation4 + $0x438] sm:$0xff]
    %v287 = vld [vmem:[#allocation4 + $0x440] sm:$0xff]
    %v288 = vld [vmem:[#allocation4 + $0x448] sm:$0xff]
    %v289 = vld [vmem:[#allocation4 + $0x450] sm:$0xff]
    %v290 = vld [vmem:[#allocation4 + $0x458] sm:$0xff]
    %v291 = vld [vmem:[#allocation4 + $0x460] sm:$0xff]
    %v292 = vld [vmem:[#allocation4 + $0x468] sm:$0xff]
    %v293 = vld [vmem:[#allocation4 + $0x470] sm:$0xff]
    %v294 = vld [vmem:[#allocation4 + $0x478] sm:$0xff]
    %v295 = vld [vmem:[#allocation4 + $0x480] sm:$0xff]
    %v296 = vld [vmem:[#allocation4 + $0x488] sm:$0xff]
    %v297 = vld [vmem:[#allocation4 + $0x490] sm:$0xff]
    %v298 = vld [vmem:[#allocation4 + $0x498] sm:$0xff]
    %v299 = vld [vmem:[#allocation4 + $0x4a0] sm:$0xff]
    %v300 = vld [vmem:[#allocation4 + $0x4a8] sm:$0xff]
    %v301 = vld [vmem:[#allocation4 + $0x4b0] sm:$0xff]
    %v302 = vld [vmem:[#allocation4 + $0x4b8] sm:$0xff]
    %v303 = vld [vmem:[#allocation4 + $0x4c0] sm:$0xff]
    %v304 = vld [vmem:[#allocation4 + $0x4c8] sm:$0xff]
    %v305 = vld [vmem:[#allocation4 + $0x4d0] sm:$0xff]
    %v306 = vld [vmem:[#allocation4 + $0x4d8] sm:$0xff]
    %v307 = vld [vmem:[#allocation4 + $0x4e0] sm:$0xff]
    %v308 = vld [vmem:[#allocation4 + $0x4e8] sm:$0xff]
    %v309 = vld [vmem:[#allocation4 + $0x4f0] sm:$0xff]
    %v310 = vld [vmem:[#allocation4 + $0x4f8] sm:$0xff]
    %v311 = vld [vmem:[#allocation4 + $0x500] sm:$0xff]
    %v312 = vld [vmem:[#allocation4 + $0x508] sm:$0xff]
    %v313 = vld [vmem:[#allocation4 + $0x510] sm:$0xff]
    %v314 = vld [vmem:[#allocation4 + $0x518] sm:$0xff]
    %v315 = vld [vmem:[#allocation4 + $0x520] sm:$0xff]
    %v316 = vld [vmem:[#allocation4 + $0x528] sm:$0xff]
    %v317 = vld [vmem:[#allocation4 + $0x530] sm:$0xff]
    %v318 = vld [vmem:[#allocation4 + $0x538] sm:$0xff]
    %v319 = vld [vmem:[#allocation4 + $0x540] sm:$0xff]
    %v320 = vld [vmem:[#allocation4 + $0x548] sm:$0xff]
    %v321 = vld [vmem:[#allocation4 + $0x550] sm:$0xff]
    %v322 = vld [vmem:[#allocation4 + $0x558] sm:$0xff]
    %v323 = vld [vmem:[#allocation4 + $0x560] sm:$0xff]
    %v324 = vld [vmem:[#allocation4 + $0x568] sm:$0xff]
    %v325 = vld [vmem:[#allocation4 + $0x570] sm:$0xff]
    %v326 = vld [vmem:[#allocation4 + $0x578] sm:$0xff]
    %v327 = vld [vmem:[#allocation4 + $0x580] sm:$0xff]
    %v328 = vld [vmem:[#allocation4 + $0x588] sm:$0xff]
    %v329 = vld [vmem:[#allocation4 + $0x590] sm:$0xff]
    %v330 = vld [vmem:[#allocation4 + $0x598] sm:$0xff]
    %v331 = vld [vmem:[#allocation4 + $0x5a0] sm:$0xff]
    %v332 = vld [vmem:[#allocation4 + $0x5a8] sm:$0xff]
    %v333 = vld [vmem:[#allocation4 + $0x5b0] sm:$0xff]
    %v334 = vld [vmem:[#allocation4 + $0x5b8] sm:$0xff]
    %v335 = vld [vmem:[#allocation4 + $0x5c0] sm:$0xff]
    %v336 = vld [vmem:[#allocation4 + $0x5c8] sm:$0xff]
    %v337 = vld [vmem:[#allocation4 + $0x5d0] sm:$0xff]
    %v338 = vld [vmem:[#allocation4 + $0x5d8] sm:$0xff]
    %v339 = vld [vmem:[#allocation4 + $0x5e0] sm:$0xff]
    %v340 = vld [vmem:[#allocation4 + $0x5e8] sm:$0xff]
    %v341 = vld [vmem:[#allocation4 + $0x5f0] sm:$0xff]
    %v342 = vld [vmem:[#allocation4 + $0x5f8] sm:$0xff]
    %v343 = vld [vmem:[%s3] sm:$0xff]
    %v344 = vld [vmem:[%s3 + $0x8] sm:$0xff]
    %v345 = vld [vmem:[%s3 + $0x10] sm:$0xff]
    %v346 = vld [vmem:[%s3 + $0x18] sm:$0xff]
    %v347 = vld [vmem:[%s3 + $0x20] sm:$0xff]
    %v348 = vld [vmem:[%s3 + $0x28] sm:$0xff]
    %v349 = vld [vmem:[%s3 + $0x30] sm:$0xff]
    %v350 = vld [vmem:[%s3 + $0x38] sm:$0xff]
    %v351 = vld [vmem:[%s3 + $0x40] sm:$0xff]
    %v352 = vld [vmem:[%s3 + $0x48] sm:$0xff]
    %v353 = vld [vmem:[%s3 + $0x50] sm:$0xff]
    %v354 = vld [vmem:[%s3 + $0x58] sm:$0xff]
    %355 = vmatprep.subr.mxu0 %v152
    %356 = vmatpush1.msra.mxu0 %v151
    %357 = vmatprep.subr.mxu0 %v158
    %358 = vmatpush1.msra.mxu0 %v157
    %359 = vmatprep.subr.mxu0 %v164
    %360 = vmatpush1.msra.mxu0 %v163
    %361 = vmatprep.subr.mxu0 %v170
    %362 = vmatpush1.msra.mxu0 %v169
    %363 = vmatprep.subr.mxu0 %v176
    %364 = vmatpush1.msra.mxu0 %v175
    %365 = vmatprep.subr.mxu0 %v182
    %366 = vmatpush1.msra.mxu0 %v181
    %367 = vmatprep.subr.mxu0 %v188
    %368 = vmatpush1.msra.mxu0 %v187
    %369 = vmatprep.subr.mxu0 %v194
    %370 = vmatpush1.msra.mxu0 %v193
    %371 = vmatprep.subr.mxu0 %v200
    %372 = vmatpush1.msra.mxu0 %v199
    %373 = vmatprep.subr.mxu0 %v206
    %374 = vmatpush1.msra.mxu0 %v205
    %375 = vmatprep.subr.mxu0 %v212
    %376 = vmatpush1.msra.mxu0 %v211
    %377 = vmatprep.subr.mxu0 %v218
    %378 = vmatpush1.msra.mxu0 %v217
    %379 = vmatprep.subr.mxu0 %v224
    %380 = vmatpush1.msra.mxu0 %v223
    %381 = vmatprep.subr.mxu0 %v230
    %382 = vmatpush1.msra.mxu0 %v229
    %383 = vmatprep.subr.mxu0 %v236
    %384 = vmatpush1.msra.mxu0 %v235
    %385 = vmatprep.subr.mxu0 %v242
    %386 = vmatpush1.msra.mxu0 %v241
    %387 = vmatprep.subr.mxu0 %v248
    %388 = vmatpush1.msra.mxu0 %v247
    %389 = vmatprep.subr.mxu0 %v254
    %390 = vmatpush1.msra.mxu0 %v253
    %391 = vmatprep.subr.mxu0 %v260
    %392 = vmatpush1.msra.mxu0 %v259
    %393 = vmatprep.subr.mxu0 %v266
    %394 = vmatpush1.msra.mxu0 %v265
    %395 = vmatprep.subr.mxu0 %v272
    %396 = vmatpush1.msra.mxu0 %v271
    %397 = vmatprep.subr.mxu0 %v278
    %398 = vmatpush1.msra.mxu0 %v277
    %399 = vmatprep.subr.mxu0 %v284
    %400 = vmatpush1.msra.mxu0 %v283
    %401 = vmatprep.subr.mxu0 %v290
    %402 = vmatpush1.msra.mxu0 %v289
    %403 = vmatprep.subr.mxu0 %v296
    %404 = vmatpush1.msra.mxu0 %v295
    %405 = vmatprep.subr.mxu0 %v302
    %406 = vmatpush1.msra.mxu0 %v301
    %407 = vmatprep.subr.mxu0 %v308
    %408 = vmatpush1.msra.mxu0 %v307
    %409 = vmatprep.subr.mxu0 %v314
    %410 = vmatpush1.msra.mxu0 %v313
    %411 = vmatprep.subr.mxu0 %v320
    %412 = vmatpush1.msra.mxu0 %v319
    %413 = vmatprep.subr.mxu0 %v326
    %414 = vmatpush1.msra.mxu0 %v325
    %415 = vmatprep.subr.mxu0 %v332
    %416 = vmatpush1.msra.mxu0 %v331
    %417 = vmatprep.subr.mxu0 %v338
    %418 = vmatpush1.msra.mxu0 %v337
    %419 = vmatprep.mubr.f32.mxu0 %v143
    %420 = vmatmul.mubr.f32.gmra.mrb[0].mxu0 %v141
    %v421 = vpop.f32.mrb[0].mxu0
    %v422 = vadd.f32 %v343, %v421
    %v423 = vpop.f32.mrb[0].mxu0
    %v424 = vadd.f32 %v344, %v423
    %425 = vmatprep.mubr.f32.mxu0 %v149
    %426 = vmatmul.mubr.f32.gmra.mrb[0].mxu0 %v147
    %v427 = vpop.f32.mrb[0].mxu0
    %v428 = vadd.f32 %v349, %v427
    %v429 = vpop.f32.mrb[0].mxu0
    %v430 = vadd.f32 %v350, %v429
    %431 = vdwg.mxu0
    %432 = vmatprep.subr.mxu0 %v154
    %433 = vmatpush1.msra.mxu0 %v153
    %434 = vmatprep.subr.mxu0 %v160
    %435 = vmatpush1.msra.mxu0 %v159
    %436 = vmatprep.subr.mxu0 %v166
    %437 = vmatpush1.msra.mxu0 %v165
    %438 = vmatprep.subr.mxu0 %v172
    %439 = vmatpush1.msra.mxu0 %v171
    %440 = vmatprep.subr.mxu0 %v178
    %441 = vmatpush1.msra.mxu0 %v177
    %442 = vmatprep.subr.mxu0 %v184
    %443 = vmatpush1.msra.mxu0 %v183
    %444 = vmatprep.subr.mxu0 %v190
    %445 = vmatpush1.msra.mxu0 %v189
    %446 = vmatprep.subr.mxu0 %v196
    %447 = vmatpush1.msra.mxu0 %v195
    %448 = vmatprep.subr.mxu0 %v202
    %449 = vmatpush1.msra.mxu0 %v201
    %450 = vmatprep.subr.mxu0 %v208
    %451 = vmatpush1.msra.mxu0 %v207
    %452 = vmatprep.subr.mxu0 %v214
    %453 = vmatpush1.msra.mxu0 %v213
    %454 = vmatprep.subr.mxu0 %v220
    %455 = vmatpush1.msra.mxu0 %v219
    %456 = vmatprep.subr.mxu0 %v226
    %457 = vmatpush1.msra.mxu0 %v225
    %458 = vmatprep.subr.mxu0 %v232
    %459 = vmatpush1.msra.mxu0 %v231
    %460 = vmatprep.subr.mxu0 %v238
    %461 = vmatpush1.msra.mxu0 %v237
    %462 = vmatprep.subr.mxu0 %v244
    %463 = vmatpush1.msra.mxu0 %v243
    %464 = vmatprep.subr.mxu0 %v250
    %465 = vmatpush1.msra.mxu0 %v249
    %466 = vmatprep.subr.mxu0 %v256
    %467 = vmatpush1.msra.mxu0 %v255
    %468 = vmatprep.subr.mxu0 %v262
    %469 = vmatpush1.msra.mxu0 %v261
    %470 = vmatprep.subr.mxu0 %v268
    %471 = vmatpush1.msra.mxu0 %v267
    %472 = vmatprep.subr.mxu0 %v274
    %473 = vmatpush1.msra.mxu0 %v273
    %474 = vmatprep.subr.mxu0 %v280
    %475 = vmatpush1.msra.mxu0 %v279
    %476 = vmatprep.subr.mxu0 %v286
    %477 = vmatpush1.msra.mxu0 %v285
    %478 = vmatprep.subr.mxu0 %v292
    %479 = vmatpush1.msra.mxu0 %v291
    %480 = vmatprep.subr.mxu0 %v298
    %481 = vmatpush1.msra.mxu0 %v297
    %482 = vmatprep.subr.mxu0 %v304
    %483 = vmatpush1.msra.mxu0 %v303
    %484 = vmatprep.subr.mxu0 %v310
    %485 = vmatpush1.msra.mxu0 %v309
    %486 = vmatprep.subr.mxu0 %v316
    %487 = vmatpush1.msra.mxu0 %v315
    %488 = vmatprep.subr.mxu0 %v322
    %489 = vmatpush1.msra.mxu0 %v321
    %490 = vmatprep.subr.mxu0 %v328
    %491 = vmatpush1.msra.mxu0 %v327
    %492 = vmatprep.subr.mxu0 %v334
    %493 = vmatpush1.msra.mxu0 %v333
    %494 = vmatprep.subr.mxu0 %v340
    %495 = vmatpush1.msra.mxu0 %v339
    %496 = vmatprep.mubr.f32.mxu0 %v143
    %497 = vmatmul.mubr.f32.gmra.mrb[0].mxu0 %v141
    %v498 = vpop.f32.mrb[0].mxu0
    %v499 = vadd.f32 %v345, %v498
    %v500 = vpop.f32.mrb[0].mxu0
    %v501 = vadd.f32 %v346, %v500
    %502 = vmatprep.mubr.f32.mxu0 %v149
    %503 = vmatmul.mubr.f32.gmra.mrb[0].mxu0 %v147
    %v504 = vpop.f32.mrb[0].mxu0
    %v505 = vadd.f32 %v351, %v504
    %v506 = vpop.f32.mrb[0].mxu0
    %v507 = vadd.f32 %v352, %v506
    %508 = vdwg.mxu0
    %509 = vmatprep.subr.mxu0 %v156
    %510 = vmatpush1.msra.mxu0 %v155
    %511 = vmatprep.subr.mxu0 %v162
    %512 = vmatpush1.msra.mxu0 %v161
    %513 = vmatprep.subr.mxu0 %v168
    %514 = vmatpush1.msra.mxu0 %v167
    %515 = vmatprep.subr.mxu0 %v174
    %516 = vmatpush1.msra.mxu0 %v173
    %517 = vmatprep.subr.mxu0 %v180
    %518 = vmatpush1.msra.mxu0 %v179
    %519 = vmatprep.subr.mxu0 %v186
    %520 = vmatpush1.msra.mxu0 %v185
    %521 = vmatprep.subr.mxu0 %v192
    %522 = vmatpush1.msra.mxu0 %v191
    %523 = vmatprep.subr.mxu0 %v198
    %524 = vmatpush1.msra.mxu0 %v197
    %525 = vmatprep.subr.mxu0 %v204
    %526 = vmatpush1.msra.mxu0 %v203
    %527 = vmatprep.subr.mxu0 %v210
    %528 = vmatpush1.msra.mxu0 %v209
    %529 = vmatprep.subr.mxu0 %v216
    %530 = vmatpush1.msra.mxu0 %v215
    %531 = vmatprep.subr.mxu0 %v222
    %532 = vmatpush1.msra.mxu0 %v221
    %533 = vmatprep.subr.mxu0 %v228
    %534 = vmatpush1.msra.mxu0 %v227
    %535 = vmatprep.subr.mxu0 %v234
    %536 = vmatpush1.msra.mxu0 %v233
    %537 = vmatprep.subr.mxu0 %v240
    %538 = vmatpush1.msra.mxu0 %v239
    %539 = vmatprep.subr.mxu0 %v246
    %540 = vmatpush1.msra.mxu0 %v245
    %541 = vmatprep.subr.mxu0 %v252
    %542 = vmatpush1.msra.mxu0 %v251
    %543 = vmatprep.subr.mxu0 %v258
    %544 = vmatpush1.msra.mxu0 %v257
    %545 = vmatprep.subr.mxu0 %v264
    %546 = vmatpush1.msra.mxu0 %v263
    %547 = vmatprep.subr.mxu0 %v270
    %548 = vmatpush1.msra.mxu0 %v269
    %549 = vmatprep.subr.mxu0 %v276
    %550 = vmatpush1.msra.mxu0 %v275
    %551 = vmatprep.subr.mxu0 %v282
    %552 = vmatpush1.msra.mxu0 %v281
    %553 = vmatprep.subr.mxu0 %v288
    %554 = vmatpush1.msra.mxu0 %v287
    %555 = vmatprep.subr.mxu0 %v294
    %556 = vmatpush1.msra.mxu0 %v293
    %557 = vmatprep.subr.mxu0 %v300
    %558 = vmatpush1.msra.mxu0 %v299
    %559 = vmatprep.subr.mxu0 %v306
    %560 = vmatpush1.msra.mxu0 %v305
    %561 = vmatprep.subr.mxu0 %v312
    %562 = vmatpush1.msra.mxu0 %v311
    %563 = vmatprep.subr.mxu0 %v318
    %564 = vmatpush1.msra.mxu0 %v317
    %565 = vmatprep.subr.mxu0 %v324
    %566 = vmatpush1.msra.mxu0 %v323
    %567 = vmatprep.subr.mxu0 %v330
    %568 = vmatpush1.msra.mxu0 %v329
    %569 = vmatprep.subr.mxu0 %v336
    %570 = vmatpush1.msra.mxu0 %v335
    %571 = vmatprep.subr.mxu0 %v342
    %572 = vmatpush1.msra.mxu0 %v341
    %573 = vmatprep.mubr.f32.mxu0 %v143
    %574 = vmatmul.mubr.f32.gmra.mrb[0].mxu0 %v141
    %v575 = vpop.f32.mrb[0].mxu0
    %v576 = vadd.f32 %v347, %v575
    %v577 = vpop.f32.mrb[0].mxu0
    %v578 = vadd.f32 %v348, %v577
    %579 = vmatprep.mubr.f32.mxu0 %v149
    %580 = vmatmul.mubr.f32.gmra.mrb[0].mxu0 %v147
    %v581 = vpop.f32.mrb[0].mxu0
    %v582 = vadd.f32 %v353, %v581
    %v583 = vpop.f32.mrb[0].mxu0
    %v584 = vadd.f32 %v354, %v583
    %585 = vdwg.mxu0
    %v586 = vmax.f32 %v422, %v499
    %v587 = vmax.f32 %v424, %v501
    %v588 = vmax.f32 %v586, %v576
    %v589 = vmax.f32 %v587, %v578
    %v590 = vmax.f32 %v588, %v589
    %591 = vmax.xlane.f32.xlu0 %v590
    %v592 = vpop.xlane.xlu0 %591
    %v593 = vmax.f32 %v428, %v505
    %v594 = vmax.f32 %v430, %v507
    %v595 = vmax.f32 %v593, %v582
    %v596 = vmax.f32 %v594, %v584
    %v597 = vmax.f32 %v595, %v596
    %598 = vmax.xlane.f32.xlu0 %v597
    %v599 = vpop.xlane.xlu0 %598
    %v600 = vsub.f32 %v422, %v592
    %v601 = vsub.f32 %v424, %v592
    %v602 = vsub.f32 %v499, %v592
    %v603 = vsub.f32 %v501, %v592
    %v604 = vsub.f32 %v576, %v592
    %v605 = vsub.f32 %v578, %v592
    %v606 = vsub.f32 %v428, %v599
    %v607 = vsub.f32 %v430, %v599
    %v608 = vsub.f32 %v505, %v599
    %v609 = vsub.f32 %v507, %v599
    %v610 = vsub.f32 %v582, %v599
    %v611 = vsub.f32 %v584, %v599
    %v612 = vmul.f32 %v600, 1.442695
    %v613 = vpow.pop %v612
    %v614 = vmul.f32 %v601, 1.442695
    %v615 = vpow.pop %v614
    %v616 = vmul.f32 %v602, 1.442695
    %v617 = vpow.pop %v616
    %v618 = vmul.f32 %v603, 1.442695
    %v619 = vpow.pop %v618
    %v620 = vmul.f32 %v604, 1.442695
    %v621 = vpow.pop %v620
    %v622 = vmul.f32 %v605, 1.442695
    %v623 = vpow.pop %v622
    %v624 = vmul.f32 %v606, 1.442695
    %v625 = vpow.pop %v624
    %v626 = vmul.f32 %v607, 1.442695
    %v627 = vpow.pop %v626
    %v628 = vmul.f32 %v608, 1.442695
    %v629 = vpow.pop %v628
    %v630 = vmul.f32 %v609, 1.442695
    %v631 = vpow.pop %v630
    %v632 = vmul.f32 %v610, 1.442695
    %v633 = vpow.pop %v632
    %v634 = vmul.f32 %v611, 1.442695
    %v635 = vpow.pop %v634
    %v636 = vadd.f32 %v613, %v615
    %v637 = vadd.f32 %v636, %v617
    %v638 = vadd.f32 %v637, %v619
    %v639 = vadd.f32 %v638, %v621
    %v640 = vadd.f32 %v639, %v623
    %641 = vadd.xlane.f32.xlu0 %v640
    %v642 = vpop.xlane.xlu0 %641
    %v643 = vadd.f32 %v625, %v627
    %v644 = vadd.f32 %v643, %v629
    %v645 = vadd.f32 %v644, %v631
    %v646 = vadd.f32 %v645, %v633
    %v647 = vadd.f32 %v646, %v635
    %648 = vadd.xlane.f32.xlu0 %v647
    %v649 = vpop.xlane.xlu0 %648
    %v650 = vlog2.pop %v642
    %v651 = vmul.f32 %v650, 0.6931472
    %v652 = vlog2.pop %v649
    %v653 = vmul.f32 %v652, 0.6931472
    %v654 = vsub.f32 %v600, %v651
    %v655 = vsub.f32 %v601, %v651
    %v656 = vsub.f32 %v602, %v651
    %v657 = vsub.f32 %v603, %v651
    %v658 = vsub.f32 %v604, %v651
    %v659 = vsub.f32 %v605, %v651
    %v660 = vsub.f32 %v606, %v653
    %v661 = vsub.f32 %v607, %v653
    %v662 = vsub.f32 %v608, %v653
    %v663 = vsub.f32 %v609, %v653
    %v664 = vsub.f32 %v610, %v653
    %v665 = vsub.f32 %v611, %v653
    %v666 = vmax.f32 %v654, -34.538776
    %v667 = vmax.f32 %v655, -34.538776
    %v668 = vmax.f32 %v656, -34.538776
    %v669 = vmax.f32 %v657, -34.538776
    %v670 = vmax.f32 %v658, -34.538776
    %v671 = vmax.f32 %v659, -34.538776
    %v672 = vmax.f32 %v660, -34.538776
    %v673 = vmax.f32 %v661, -34.538776
    %v674 = vmax.f32 %v662, -34.538776
    %v675 = vmax.f32 %v663, -34.538776
    %v676 = vmax.f32 %v664, -34.538776
    %v677 = vmax.f32 %v665, -34.538776
    %s678 = smul.u32 768, 1
    %s679 = sshll.u32 %s678, 4
    %680 = dma.done [#allocation3], %s679
    %v681 = vld [vmem:[#allocation2] sm:$0xff]
    %v682 = vld [vmem:[#allocation2 + $0x8] sm:$0xff]
    %v683 = vld [vmem:[#allocation2 + $0x10] sm:$0xff]
    %v684 = vld [vmem:[#allocation2 + $0x18] sm:$0xff]
    %v685 = vld [vmem:[#allocation2 + $0x20] sm:$0xff]
    %v686 = vld [vmem:[#allocation2 + $0x28] sm:$0xff]
    %v687 = vld [vmem:[#allocation2 + $0x30] sm:$0xff]
    %v688 = vld [vmem:[#allocation2 + $0x38] sm:$0xff]
    %v689 = vld [vmem:[#allocation2 + $0x40] sm:$0xff]
    %v690 = vld [vmem:[#allocation2 + $0x48] sm:$0xff]
    %v691 = vld [vmem:[#allocation2 + $0x50] sm:$0xff]
    %v692 = vld [vmem:[#allocation2 + $0x58] sm:$0xff]
    %v693 = vld [vmem:[#allocation2 + $0x60] sm:$0xff]
    %v694 = vld [vmem:[#allocation2 + $0x68] sm:$0xff]
    %v695 = vld [vmem:[#allocation2 + $0x70] sm:$0xff]
    %v696 = vld [vmem:[#allocation2 + $0x78] sm:$0xff]
    %v697 = vld [vmem:[#allocation2 + $0x80] sm:$0xff]
    %v698 = vld [vmem:[#allocation2 + $0x88] sm:$0xff]
    %v699 = vld [vmem:[#allocation2 + $0x90] sm:$0xff]
    %v700 = vld [vmem:[#allocation2 + $0x98] sm:$0xff]
    %v701 = vld [vmem:[#allocation2 + $0xa0] sm:$0xff]
    %v702 = vld [vmem:[#allocation2 + $0xa8] sm:$0xff]
    %v703 = vld [vmem:[#allocation2 + $0xb0] sm:$0xff]
    %v704 = vld [vmem:[#allocation2 + $0xb8] sm:$0xff]
    %v705 = vld [vmem:[#allocation2 + $0xc0] sm:$0xff]
    %v706 = vld [vmem:[#allocation2 + $0xc8] sm:$0xff]
    %v707 = vld [vmem:[#allocation2 + $0xd0] sm:$0xff]
    %v708 = vld [vmem:[#allocation2 + $0xd8] sm:$0xff]
    %v709 = vld [vmem:[#allocation2 + $0xe0] sm:$0xff]
    %v710 = vld [vmem:[#allocation2 + $0xe8] sm:$0xff]
    %v711 = vld [vmem:[#allocation2 + $0xf0] sm:$0xff]
    %v712 = vld [vmem:[#allocation2 + $0xf8] sm:$0xff]
    %v713 = vld [vmem:[#allocation2 + $0x100] sm:$0xff]
    %v714 = vld [vmem:[#allocation2 + $0x108] sm:$0xff]
    %v715 = vld [vmem:[#allocation2 + $0x110] sm:$0xff]
    %v716 = vld [vmem:[#allocation2 + $0x118] sm:$0xff]
    %v717 = vld [vmem:[#allocation2 + $0x120] sm:$0xff]
    %v718 = vld [vmem:[#allocation2 + $0x128] sm:$0xff]
    %v719 = vld [vmem:[#allocation2 + $0x130] sm:$0xff]
    %v720 = vld [vmem:[#allocation2 + $0x138] sm:$0xff]
    %v721 = vld [vmem:[#allocation2 + $0x140] sm:$0xff]
    %v722 = vld [vmem:[#allocation2 + $0x148] sm:$0xff]
    %v723 = vld [vmem:[#allocation2 + $0x150] sm:$0xff]
    %v724 = vld [vmem:[#allocation2 + $0x158] sm:$0xff]
    %v725 = vld [vmem:[#allocation2 + $0x160] sm:$0xff]
    %v726 = vld [vmem:[#allocation2 + $0x168] sm:$0xff]
    %v727 = vld [vmem:[#allocation2 + $0x170] sm:$0xff]
    %v728 = vld [vmem:[#allocation2 + $0x178] sm:$0xff]
    %v729 = vld [vmem:[#allocation2 + $0x180] sm:$0xff]
    %v730 = vld [vmem:[#allocation2 + $0x188] sm:$0xff]
    %v731 = vld [vmem:[#allocation2 + $0x190] sm:$0xff]
    %v732 = vld [vmem:[#allocation2 + $0x198] sm:$0xff]
    %v733 = vld [vmem:[#allocation2 + $0x1a0] sm:$0xff]
    %v734 = vld [vmem:[#allocation2 + $0x1a8] sm:$0xff]
    %v735 = vld [vmem:[#allocation2 + $0x1b0] sm:$0xff]
    %v736 = vld [vmem:[#allocation2 + $0x1b8] sm:$0xff]
    %v737 = vld [vmem:[#allocation2 + $0x1c0] sm:$0xff]
    %v738 = vld [vmem:[#allocation2 + $0x1c8] sm:$0xff]
    %v739 = vld [vmem:[#allocation2 + $0x1d0] sm:$0xff]
    %v740 = vld [vmem:[#allocation2 + $0x1d8] sm:$0xff]
    %v741 = vld [vmem:[#allocation2 + $0x1e0] sm:$0xff]
    %v742 = vld [vmem:[#allocation2 + $0x1e8] sm:$0xff]
    %v743 = vld [vmem:[#allocation2 + $0x1f0] sm:$0xff]
    %v744 = vld [vmem:[#allocation2 + $0x1f8] sm:$0xff]
    %v745 = vld [vmem:[#allocation2 + $0x200] sm:$0xff]
    %v746 = vld [vmem:[#allocation2 + $0x208] sm:$0xff]
    %v747 = vld [vmem:[#allocation2 + $0x210] sm:$0xff]
    %v748 = vld [vmem:[#allocation2 + $0x218] sm:$0xff]
    %v749 = vld [vmem:[#allocation2 + $0x220] sm:$0xff]
    %v750 = vld [vmem:[#allocation2 + $0x228] sm:$0xff]
    %v751 = vld [vmem:[#allocation2 + $0x230] sm:$0xff]
    %v752 = vld [vmem:[#allocation2 + $0x238] sm:$0xff]
    %v753 = vld [vmem:[#allocation2 + $0x240] sm:$0xff]
    %v754 = vld [vmem:[#allocation2 + $0x248] sm:$0xff]
    %v755 = vld [vmem:[#allocation2 + $0x250] sm:$0xff]
    %v756 = vld [vmem:[#allocation2 + $0x258] sm:$0xff]
    %v757 = vld [vmem:[#allocation2 + $0x260] sm:$0xff]
    %v758 = vld [vmem:[#allocation2 + $0x268] sm:$0xff]
    %v759 = vld [vmem:[#allocation2 + $0x270] sm:$0xff]
    %v760 = vld [vmem:[#allocation2 + $0x278] sm:$0xff]
    %v761 = vld [vmem:[#allocation2 + $0x280] sm:$0xff]
    %v762 = vld [vmem:[#allocation2 + $0x288] sm:$0xff]
    %v763 = vld [vmem:[#allocation2 + $0x290] sm:$0xff]
    %v764 = vld [vmem:[#allocation2 + $0x298] sm:$0xff]
    %v765 = vld [vmem:[#allocation2 + $0x2a0] sm:$0xff]
    %v766 = vld [vmem:[#allocation2 + $0x2a8] sm:$0xff]
    %v767 = vld [vmem:[#allocation2 + $0x2b0] sm:$0xff]
    %v768 = vld [vmem:[#allocation2 + $0x2b8] sm:$0xff]
    %v769 = vld [vmem:[#allocation2 + $0x2c0] sm:$0xff]
    %v770 = vld [vmem:[#allocation2 + $0x2c8] sm:$0xff]
    %v771 = vld [vmem:[#allocation2 + $0x2d0] sm:$0xff]
    %v772 = vld [vmem:[#allocation2 + $0x2d8] sm:$0xff]
    %v773 = vld [vmem:[#allocation2 + $0x2e0] sm:$0xff]
    %v774 = vld [vmem:[#allocation2 + $0x2e8] sm:$0xff]
    %v775 = vld [vmem:[#allocation2 + $0x2f0] sm:$0xff]
    %v776 = vld [vmem:[#allocation2 + $0x2f8] sm:$0xff]
    %777 = vmatprep.subr.mxu0 0.0
    %778 = vmatpush1.msra.mxu0 %v681
    %779 = vmatprep.subr.mxu0 0.0
    %780 = vmatpush1.msra.mxu0 %v682
    %781 = vmatprep.subr.mxu0 0.0
    %782 = vmatpush1.msra.mxu0 %v683
    %783 = vmatprep.subr.mxu0 0.0
    %784 = vmatpush1.msra.mxu0 %v684
    %785 = vmatprep.subr.mxu0 0.0
    %786 = vmatpush1.msra.mxu0 %v685
    %787 = vmatprep.subr.mxu0 0.0
    %788 = vmatpush1.msra.mxu0 %v686
    %789 = vmatprep.subr.mxu0 0.0
    %790 = vmatpush1.msra.mxu0 %v687
    %791 = vmatprep.subr.mxu0 0.0
    %792 = vmatpush1.msra.mxu0 %v688
    %793 = vmatprep.subr.mxu0 0.0
    %794 = vmatpush1.msra.mxu0 %v689
    %795 = vmatprep.subr.mxu0 0.0
    %796 = vmatpush1.msra.mxu0 %v690
    %797 = vmatprep.subr.mxu0 0.0
    %798 = vmatpush1.msra.mxu0 %v691
    %799 = vmatprep.subr.mxu0 0.0
    %800 = vmatpush1.msra.mxu0 %v692
    %801 = vmatprep.subr.mxu0 0.0
    %802 = vmatpush1.msra.mxu0 %v693
    %803 = vmatprep.subr.mxu0 0.0
    %804 = vmatpush1.msra.mxu0 %v694
    %805 = vmatprep.subr.mxu0 0.0
    %806 = vmatpush1.msra.mxu0 %v695
    %807 = vmatprep.subr.mxu0 0.0
    %808 = vmatpush1.msra.mxu0 %v696
    %809 = vmatprep.subr.mxu0 0.0
    %810 = vmatpush1.msra.mxu0 %v697
    %811 = vmatprep.subr.mxu0 0.0
    %812 = vmatpush1.msra.mxu0 %v698
    %813 = vmatprep.subr.mxu0 0.0
    %814 = vmatpush1.msra.mxu0 %v699
    %815 = vmatprep.subr.mxu0 0.0
    %816 = vmatpush1.msra.mxu0 %v700
    %817 = vmatprep.subr.mxu0 0.0
    %818 = vmatpush1.msra.mxu0 %v701
    %819 = vmatprep.subr.mxu0 0.0
    %820 = vmatpush1.msra.mxu0 %v702
    %821 = vmatprep.subr.mxu0 0.0
    %822 = vmatpush1.msra.mxu0 %v703
    %823 = vmatprep.subr.mxu0 0.0
    %824 = vmatpush1.msra.mxu0 %v704
    %825 = vmatprep.subr.mxu0 0.0
    %826 = vmatpush1.msra.mxu0 %v705
    %827 = vmatprep.subr.mxu0 0.0
    %828 = vmatpush1.msra.mxu0 %v706
    %829 = vmatprep.subr.mxu0 0.0
    %830 = vmatpush1.msra.mxu0 %v707
    %831 = vmatprep.subr.mxu0 0.0
    %832 = vmatpush1.msra.mxu0 %v708
    %833 = vmatprep.subr.mxu0 0.0
    %834 = vmatpush1.msra.mxu0 %v709
    %835 = vmatprep.subr.mxu0 0.0
    %836 = vmatpush1.msra.mxu0 %v710
    %837 = vmatprep.subr.mxu0 0.0
    %838 = vmatpush1.msra.mxu0 %v711
    %839 = vmatprep.subr.mxu0 0.0
    %840 = vmatpush1.msra.mxu0 %v712
    %841 = vmatprep.mubr.f32.mxu0 %v667
    %842 = vmatmul.mubr.f32.gmra.mrb[0].mxu0 %v666
    %v843 = vpop.f32.mrb[0].mxu0
    %v844 = vadd.f32 0.0, %v843
    %v845 = vpop.f32.mrb[0].mxu0
    %846 = vmatprep.mubr.f32.mxu0 %v673
    %847 = vmatmul.mubr.f32.gmra.mrb[0].mxu0 %v672
    %v848 = vpop.f32.mrb[0].mxu0
    %v849 = vadd.f32 0.0, %v848
    %v850 = vpop.f32.mrb[0].mxu0
    %851 = vdwg.mxu0
    %852 = vmatprep.subr.mxu0 0.0
    %853 = vmatpush1.msra.mxu0 %v713
    %854 = vmatprep.subr.mxu0 0.0
    %855 = vmatpush1.msra.mxu0 %v714
    %856 = vmatprep.subr.mxu0 0.0
    %857 = vmatpush1.msra.mxu0 %v715
    %858 = vmatprep.subr.mxu0 0.0
    %859 = vmatpush1.msra.mxu0 %v716
    %860 = vmatprep.subr.mxu0 0.0
    %861 = vmatpush1.msra.mxu0 %v717
    %862 = vmatprep.subr.mxu0 0.0
    %863 = vmatpush1.msra.mxu0 %v718
    %864 = vmatprep.subr.mxu0 0.0
    %865 = vmatpush1.msra.mxu0 %v719
    %866 = vmatprep.subr.mxu0 0.0
    %867 = vmatpush1.msra.mxu0 %v720
    %868 = vmatprep.subr.mxu0 0.0
    %869 = vmatpush1.msra.mxu0 %v721
    %870 = vmatprep.subr.mxu0 0.0
    %871 = vmatpush1.msra.mxu0 %v722
    %872 = vmatprep.subr.mxu0 0.0
    %873 = vmatpush1.msra.mxu0 %v723
    %874 = vmatprep.subr.mxu0 0.0
    %875 = vmatpush1.msra.mxu0 %v724
    %876 = vmatprep.subr.mxu0 0.0
    %877 = vmatpush1.msra.mxu0 %v725
    %878 = vmatprep.subr.mxu0 0.0
    %879 = vmatpush1.msra.mxu0 %v726
    %880 = vmatprep.subr.mxu0 0.0
    %881 = vmatpush1.msra.mxu0 %v727
    %882 = vmatprep.subr.mxu0 0.0
    %883 = vmatpush1.msra.mxu0 %v728
    %884 = vmatprep.subr.mxu0 0.0
    %885 = vmatpush1.msra.mxu0 %v729
    %886 = vmatprep.subr.mxu0 0.0
    %887 = vmatpush1.msra.mxu0 %v730
    %888 = vmatprep.subr.mxu0 0.0
    %889 = vmatpush1.msra.mxu0 %v731
    %890 = vmatprep.subr.mxu0 0.0
    %891 = vmatpush1.msra.mxu0 %v732
    %892 = vmatprep.subr.mxu0 0.0
    %893 = vmatpush1.msra.mxu0 %v733
    %894 = vmatprep.subr.mxu0 0.0
    %895 = vmatpush1.msra.mxu0 %v734
    %896 = vmatprep.subr.mxu0 0.0
    %897 = vmatpush1.msra.mxu0 %v735
    %898 = vmatprep.subr.mxu0 0.0
    %899 = vmatpush1.msra.mxu0 %v736
    %900 = vmatprep.subr.mxu0 0.0
    %901 = vmatpush1.msra.mxu0 %v737
    %902 = vmatprep.subr.mxu0 0.0
    %903 = vmatpush1.msra.mxu0 %v738
    %904 = vmatprep.subr.mxu0 0.0
    %905 = vmatpush1.msra.mxu0 %v739
    %906 = vmatprep.subr.mxu0 0.0
    %907 = vmatpush1.msra.mxu0 %v740
    %908 = vmatprep.subr.mxu0 0.0
    %909 = vmatpush1.msra.mxu0 %v741
    %910 = vmatprep.subr.mxu0 0.0
    %911 = vmatpush1.msra.mxu0 %v742
    %912 = vmatprep.subr.mxu0 0.0
    %913 = vmatpush1.msra.mxu0 %v743
    %914 = vmatprep.subr.mxu0 0.0
    %915 = vmatpush1.msra.mxu0 %v744
    %916 = vmatprep.mubr.f32.mxu0 %v669
    %917 = vmatmul.mubr.f32.gmra.mrb[0].mxu0 %v668
    %v918 = vpop.f32.mrb[0].mxu0
    %v919 = vadd.f32 %v844, %v918
    %v920 = vpop.f32.mrb[0].mxu0
    %921 = vmatprep.mubr.f32.mxu0 %v675
    %922 = vmatmul.mubr.f32.gmra.mrb[0].mxu0 %v674
    %v923 = vpop.f32.mrb[0].mxu0
    %v924 = vadd.f32 %v849, %v923
    %v925 = vpop.f32.mrb[0].mxu0
    %926 = vdwg.mxu0
    %927 = vmatprep.subr.mxu0 0.0
    %928 = vmatpush1.msra.mxu0 %v745
    %929 = vmatprep.subr.mxu0 0.0
    %930 = vmatpush1.msra.mxu0 %v746
    %931 = vmatprep.subr.mxu0 0.0
    %932 = vmatpush1.msra.mxu0 %v747
    %933 = vmatprep.subr.mxu0 0.0
    %934 = vmatpush1.msra.mxu0 %v748
    %935 = vmatprep.subr.mxu0 0.0
    %936 = vmatpush1.msra.mxu0 %v749
    %937 = vmatprep.subr.mxu0 0.0
    %938 = vmatpush1.msra.mxu0 %v750
    %939 = vmatprep.subr.mxu0 0.0
    %940 = vmatpush1.msra.mxu0 %v751
    %941 = vmatprep.subr.mxu0 0.0
    %942 = vmatpush1.msra.mxu0 %v752
    %943 = vmatprep.subr.mxu0 0.0
    %944 = vmatpush1.msra.mxu0 %v753
    %945 = vmatprep.subr.mxu0 0.0
    %946 = vmatpush1.msra.mxu0 %v754
    %947 = vmatprep.subr.mxu0 0.0
    %948 = vmatpush1.msra.mxu0 %v755
    %949 = vmatprep.subr.mxu0 0.0
    %950 = vmatpush1.msra.mxu0 %v756
    %951 = vmatprep.subr.mxu0 0.0
    %952 = vmatpush1.msra.mxu0 %v757
    %953 = vmatprep.subr.mxu0 0.0
    %954 = vmatpush1.msra.mxu0 %v758
    %955 = vmatprep.subr.mxu0 0.0
    %956 = vmatpush1.msra.mxu0 %v759
    %957 = vmatprep.subr.mxu0 0.0
    %958 = vmatpush1.msra.mxu0 %v760
    %959 = vmatprep.subr.mxu0 0.0
    %960 = vmatpush1.msra.mxu0 %v761
    %961 = vmatprep.subr.mxu0 0.0
    %962 = vmatpush1.msra.mxu0 %v762
    %963 = vmatprep.subr.mxu0 0.0
    %964 = vmatpush1.msra.mxu0 %v763
    %965 = vmatprep.subr.mxu0 0.0
    %966 = vmatpush1.msra.mxu0 %v764
    %967 = vmatprep.subr.mxu0 0.0
    %968 = vmatpush1.msra.mxu0 %v765
    %969 = vmatprep.subr.mxu0 0.0
    %970 = vmatpush1.msra.mxu0 %v766
    %971 = vmatprep.subr.mxu0 0.0
    %972 = vmatpush1.msra.mxu0 %v767
    %973 = vmatprep.subr.mxu0 0.0
    %974 = vmatpush1.msra.mxu0 %v768
    %975 = vmatprep.subr.mxu0 0.0
    %976 = vmatpush1.msra.mxu0 %v769
    %977 = vmatprep.subr.mxu0 0.0
    %978 = vmatpush1.msra.mxu0 %v770
    %979 = vmatprep.subr.mxu0 0.0
    %980 = vmatpush1.msra.mxu0 %v771
    %981 = vmatprep.subr.mxu0 0.0
    %982 = vmatpush1.msra.mxu0 %v772
    %983 = vmatprep.subr.mxu0 0.0
    %984 = vmatpush1.msra.mxu0 %v773
    %985 = vmatprep.subr.mxu0 0.0
    %986 = vmatpush1.msra.mxu0 %v774
    %987 = vmatprep.subr.mxu0 0.0
    %988 = vmatpush1.msra.mxu0 %v775
    %989 = vmatprep.subr.mxu0 0.0
    %990 = vmatpush1.msra.mxu0 %v776
    %991 = vmatprep.mubr.f32.mxu0 %v671
    %992 = vmatmul.mubr.f32.gmra.mrb[0].mxu0 %v670
    %v993 = vpop.f32.mrb[0].mxu0
    %v994 = vadd.f32 %v919, %v993
    %v995 = vpop.f32.mrb[0].mxu0
    %996 = vmatprep.mubr.f32.mxu0 %v677
    %997 = vmatmul.mubr.f32.gmra.mrb[0].mxu0 %v676
    %v998 = vpop.f32.mrb[0].mxu0
    %v999 = vadd.f32 %v924, %v998
    %v1000 = vpop.f32.mrb[0].mxu0
    %1001 = vdwg.mxu0
    %1002 = vst [vmem:[#allocation7] sm:$0xff] %v994
    %1003 = vst [vmem:[#allocation7 + $0x8] sm:$0xff] %v999
    // Predicated region
    $region26: #{clm_order3_slab.1} parent=1 // pred_check
      _
    $region27: #{clm_order3_slab.1} parent=1 // pred_check_branch
      %1005 = sbr.rel (0) target = $region29
    $region28: #{clm_order3_slab.1} parent=1 // pred_region
      %s1007 = ssub.s32 256, 256
      %1008 = vsyncadd [#allocation6], %s1007
      %s1009 = sshll.u32 [#allocation7], 4
      %s1010 = int_to_ptr.vmem [resolvable:$true] %s1009
      %1015 = dma.vmem_to_hbm [thread:$0]  %s1010, 256, %s5, [#allocation6], 128, 128, 8
    $region29: #{clm_order3_slab.1} parent=1 // pred_fallthru
      _
    // Predicated region
    $region30: #{clm_order3_slab.1} parent=1 // pred_check
      _
    $region31: #{clm_order3_slab.1} parent=1 // pred_check_branch
      %1017 = sbr.rel (0) target = $region33
    $region32: #{clm_order3_slab.1} parent=1 // pred_region
      %1018 = dma.done [#allocation6], 256
    $region33: #{clm_order3_slab.1} parent=1 // pred_fallthru
      _
    %1019 = vsyncpa [#allocation5], 1
    %1020 = vsyncpa [#allocation6], 1
  %1021 = vsyncmov [#allocation3]
  %s1022 = vpop.sfrf %1021
  %p1023 = scmp.eq.s32.totalorder %s1022, 0
  %p1024 = pneg %p1023
  %1026 = shalt.err (%p1024)

</llo_original>
